<compile_context>
chip_gen: v7x
topology: tpu7x:2x2x1
jax: 0.10.0
libtpu: 0.0.40
codegen_flags: <defaults>
</compile_context>

<pallas_src>
import functools

import jax
import jax.numpy as jnp
from jax import lax
from jax.experimental import pallas as pl
from jax.experimental.pallas import tpu as pltpu

TEMP = 0.05
EPS = 1e-8                      # torch.nn.CosineSimilarity default eps
_RESIDENT_Y_BYTES = 4 << 20     # keep y fully VMEM-resident if at most this big
_VMEM_BUDGET = 40 << 20         # per-step footprint target (fits v7x's 64 MiB)


def _round_up(a, b):
    return ((a + b - 1) // b) * b


def _footprint(tn, tm, tk, in_bytes, out_bytes):
    """Rough per-grid-step VMEM footprint used for tile selection."""
    return (2 * (tn + tm) * tk * in_bytes      # double-buffered x / y tiles
            + 2 * (tn + tm) * 4                # inv-norm vectors (f32)
            + 2 * tn * tm * out_bytes          # double-buffered output tile
            + tn * tm * 4)                     # f32 accumulator scratch


def _cos_sim_kernel(x_ref, inx_ref, y_ref, iny_ref, o_ref, acc_ref, *, inv_clamp):
    k = pl.program_id(2)

    @pl.when(k == 0)
    def _():
        acc_ref[...] = jnp.zeros_like(acc_ref)

    # MXU: NT contraction in the operands' native dtype, f32 accumulation
    # (no explicit transpose through the XLU).
    acc_ref[...] += lax.dot_general(
        x_ref[...], y_ref[...],
        dimension_numbers=(((1,), (1,)), ((), ())),
        preferred_element_type=jnp.float32)                       # (TN, TM)

    @pl.when(k == pl.num_programs(2) - 1)
    def _():
        # 1/max(nx*ny, eps)/temp == min((1/nx) * ((1/temp)/ny), (1/temp)/eps)
        # with exact rank-1 reciprocals precomputed in the wrapper.
        inv = jnp.minimum(inx_ref[...] * iny_ref[...], inv_clamp)  # (TN,1)*(1,TM)
        o_ref[...] = (acc_ref[...] * inv).astype(o_ref.dtype)


def cos_similarity(x, y, temp=TEMP, *, block_n=512, block_m=512, block_k=None,
                   out_dtype=None, cast_to_bf16=False,
                   resident_y_bytes=_RESIDENT_Y_BYTES, vmem_budget=_VMEM_BUDGET):
    """Pairwise cosine similarity scaled by 1/temp.   x:(N,D), y:(M,D) -> (N,M)."""
    N, D = x.shape
    M, Dy = y.shape
    assert D == Dy, "feature dims must match"

    if out_dtype is None:
        out_dtype = jnp.result_type(x.dtype, y.dtype)
        if not jnp.issubdtype(out_dtype, jnp.floating):
            out_dtype = jnp.float32

    # --- Row norms hoisted out of the tile loop; exact rank-1 reciprocals. ---
    xf = x.astype(jnp.float32)
    yf = y.astype(jnp.float32)
    inv_temp = float(1.0 / temp)
    nx = jnp.sqrt(jnp.sum(xf * xf, axis=-1, keepdims=True))        # (N, 1)
    ny = jnp.sqrt(jnp.sum(yf * yf, axis=-1, keepdims=True))        # (M, 1)
    inv_nx = 1.0 / nx                                              # (N, 1)
    inv_ny = (inv_temp / ny).T                                     # (1, M), 1/temp folded

    # --- Matmul operands (optionally bf16; integers upcast to f32). ---
    if cast_to_bf16:
        xm, ym = xf.astype(jnp.bfloat16), yf.astype(jnp.bfloat16)
    elif jnp.issubdtype(x.dtype, jnp.floating) and jnp.issubdtype(y.dtype, jnp.floating):
        xm, ym = x, y
    else:
        xm, ym = xf, yf   # v7x MXU has no int path

    in_bytes = jnp.dtype(xm.dtype).itemsize
    out_bytes = jnp.dtype(out_dtype).itemsize

    # --- Tile selection. ---
    tn = min(block_n, _round_up(N, 8))
    resident = (block_k is None
                and M * D * in_bytes <= resident_y_bytes
                and _footprint(tn, M, D, in_bytes, out_bytes) <= vmem_budget)
    if resident:
        # Whole y (and the full-width output row panel) stays VMEM-resident:
        # constant y block index -> single DMA, 1-D parallel grid over N tiles.
        tm, tk = M, D
    else:
        tm = min(block_m, _round_up(M, 128))
        if block_k is not None:
            tk = block_k
            assert tk == D or (tk % 128 == 0 and D % tk == 0), \
                "block_k must equal D or be a 128-multiple divisor of D"
        else:
            tk = D
            # K-tile (keeping tk | D and tk % 128 == 0) until the step fits VMEM.
            while (_footprint(tn, tm, tk, in_bytes, out_bytes) > vmem_budget
                   and tk % 256 == 0):
                tk //= 2
        # Last resort: shrink the output tile (keep 8 / 128 alignment).
        while _footprint(tn, tm, tk, in_bytes, out_bytes) > vmem_budget:
            if tm >= 256 and tm % 256 == 0 and tm >= tn:
                tm //= 2
            elif tn >= 16 and tn % 16 == 0:
                tn //= 2
            elif tm >= 256 and tm % 256 == 0:
                tm //= 2
            else:
                # TODO(synk): for huge D that is not a 128-multiple, zero-pad
                # along D (safe for dot and norms) to enable ragged-free K tiling.
                break

    gn, gm, gk = pl.cdiv(N, tn), pl.cdiv(M, tm), D // tk
    est = _footprint(tn, tm, tk, in_bytes, out_bytes)
    vmem_limit = int(min(max(est + (8 << 20), 32 << 20), 60 << 20))

    kernel = functools.partial(_cos_sim_kernel, inv_clamp=float(inv_temp / EPS))
    out = pl.pallas_call(
        kernel,
        out_shape=jax.ShapeDtypeStruct((N, M), out_dtype),
        grid_spec=pltpu.PrefetchScalarGridSpec(
            num_scalar_prefetch=0,
            grid=(gn, gm, gk),
            in_specs=[
                pl.BlockSpec((tn, tk), lambda i, j, k: (i, k)),   # x rows
                pl.BlockSpec((tn, 1), lambda i, j, k: (i, 0)),    # 1/||x|| column
                pl.BlockSpec((tm, tk), lambda i, j, k: (j, k)),   # y rows
                pl.BlockSpec((1, tm), lambda i, j, k: (0, j)),    # (1/temp)/||y|| row
            ],
            out_specs=pl.BlockSpec((tn, tm), lambda i, j, k: (i, j)),
            scratch_shapes=[pltpu.VMEM((tn, tm), jnp.float32)],
        ),
        compiler_params=pltpu.CompilerParams(
            dimension_semantics=("parallel", "parallel", "arbitrary"),
            vmem_limit_bytes=vmem_limit),
    )(xm, inv_nx, ym, inv_ny)
    return out


def _reference(x, y, temp=TEMP):
    x32 = x.astype(jnp.float32)
    y32 = y.astype(jnp.float32)
    dots = x32 @ y32.T
    nx = jnp.linalg.norm(x32, axis=-1, keepdims=True)
    ny = jnp.linalg.norm(y32, axis=-1, keepdims=True)
    return dots / jnp.maximum(nx * ny.T, EPS) / temp


if __name__ == "__main__":
    key = jax.random.PRNGKey(0)

    # Test A: small shapes consistent with the module (batch, hidden) embeddings.
    # Exercises the resident-y 1-D-grid fast path.
    kx, ky = jax.random.split(key)
    N, M, D = 8, 8, 32
    x = jax.random.normal(kx, (N, D), dtype=jnp.float32)
    y = jax.random.normal(ky, (M, D), dtype=jnp.float32)
    out = jax.block_until_ready(cos_similarity(x, y))
    ref = _reference(x, y)
    assert out.shape == (N, M)
    assert jnp.allclose(out, ref, rtol=1e-2, atol=1e-2), float(
        jnp.max(jnp.abs(out - ref)))

    # Test B: ragged (non-tile-multiple) N and M on the tiled 2-D path,
    # no wrapper padding / output slicing.
    kx2, ky2 = jax.random.split(jax.random.PRNGKey(1))
    N2, M2, D2 = 48, 200, 96
    x2 = jax.random.normal(kx2, (N2, D2), dtype=jnp.float32)
    y2 = jax.random.normal(ky2, (M2, D2), dtype=jnp.float32)
    out2 = jax.block_until_ready(
        cos_similarity(x2, y2, block_n=32, block_m=128, resident_y_bytes=0))
    ref2 = _reference(x2, y2)
    assert out2.shape == (N2, M2)
    assert jnp.allclose(out2, ref2, rtol=1e-2, atol=1e-2), float(
        jnp.max(jnp.abs(out2 - ref2)))

    # Test C: forced K-axis tiling (f32 VMEM accumulator across the D axis).
    kx3, ky3 = jax.random.split(jax.random.PRNGKey(2))
    N3, M3, D3 = 64, 128, 256
    x3 = jax.random.normal(kx3, (N3, D3), dtype=jnp.float32)
    y3 = jax.random.normal(ky3, (M3, D3), dtype=jnp.float32)
    out3 = jax.block_until_ready(
        cos_similarity(x3, y3, block_k=128, resident_y_bytes=0))
    ref3 = _reference(x3, y3)
    assert out3.shape == (N3, M3)
    assert jnp.allclose(out3, ref3, rtol=1e-2, atol=1e-2), float(
        jnp.max(jnp.abs(out3 - ref3)))

    # Test D: optional bf16 matmul-operand cast (looser tolerance).
    out4 = jax.block_until_ready(cos_similarity(x, y, cast_to_bf16=True))
    assert jnp.allclose(out4, ref, rtol=5e-2, atol=1e-1), float(
        jnp.max(jnp.abs(out4 - ref)))

    print("KERNEL_OK")
</pallas_src>

<mosaic_0001>
module attributes {stable_mosaic.version = 11 : i64} {
  func.func @_cos_sim_kernel(%arg0: i32, %arg1: i32, %arg2: i32, %arg3: memref<8x32xf32, #tpu.memory_space<vmem>>, %arg4: memref<8x1xf32, #tpu.memory_space<vmem>>, %arg5: memref<8x32xf32, #tpu.memory_space<vmem>>, %arg6: memref<1x8xf32, #tpu.memory_space<vmem>>, %arg7: memref<8x8xf32, #tpu.memory_space<vmem>>, %arg8: memref<8x8xf32, #tpu.memory_space<vmem>>) attributes {dimension_semantics = [#tpu.dimension_semantics<parallel>, #tpu.dimension_semantics<parallel>, #tpu.dimension_semantics<arbitrary>], iteration_bounds = array<i64: 1, 1, 1>, scalar_prefetch = 0 : i64, scratch_operands = 1 : i64, tpu.core_type = #tpu.core_type<tc>, window_params = [{transform_indices = @transform_0, window_bounds = array<i64: 8, 32>}, {transform_indices = @transform_1, window_bounds = array<i64: 8, 1>}, {transform_indices = @transform_2, window_bounds = array<i64: 8, 32>}, {transform_indices = @transform_3, window_bounds = array<i64: 1, 8>}, {transform_indices = @transform_4, window_bounds = array<i64: 8, 8>}]} {
    %c0_i32 = arith.constant 0 : i32
    %0 = arith.cmpi eq, %arg2, %c0_i32 : i32
    %1 = arith.extui %0 : i1 to i32
    %c0_i32_0 = arith.constant 0 : i32
    %2 = arith.cmpi ne, %1, %c0_i32_0 : i32
    scf.if %2 {
      %cst_10 = arith.constant 0.000000e+00 : f32
      %12 = vector.broadcast %cst_10 : f32 to vector<8x8xf32>
      %c0_11 = arith.constant 0 : index
      %c0_12 = arith.constant 0 : index
      %13 = vector.load %arg8[%c0_11, %c0_12] : memref<8x8xf32, #tpu.memory_space<vmem>>, vector<8x8xf32>
      tpu.vector_store %arg8[%c0_11, %c0_12], %12 {strides = array<i32>} : memref<8x8xf32, #tpu.memory_space<vmem>>, vector<8x8xf32>,
    } else {
    }
    %c0 = arith.constant 0 : index
    %c0_1 = arith.constant 0 : index
    %3 = vector.load %arg8[%c0, %c0_1] : memref<8x8xf32, #tpu.memory_space<vmem>>, vector<8x8xf32>
    %c0_2 = arith.constant 0 : index
    %c0_3 = arith.constant 0 : index
    %4 = vector.load %arg3[%c0_2, %c0_3] : memref<8x32xf32, #tpu.memory_space<vmem>>, vector<8x32xf32>
    %c0_4 = arith.constant 0 : index
    %c0_5 = arith.constant 0 : index
    %5 = vector.load %arg5[%c0_4, %c0_5] : memref<8x32xf32, #tpu.memory_space<vmem>>, vector<8x32xf32>
    %cst = arith.constant dense<0.000000e+00> : vector<8x8xf32>
    %6 = tpu.matmul %4, %5, %cst {dimension_numbers = #tpu.dot_dimension_numbers<[1], [1], [0], [0], [0, 0, 1, 0], [], []>} : vector<8x32xf32>, vector<8x32xf32>, vector<8x8xf32> -> vector<8x8xf32>
    %7 = arith.addf %3, %6 : vector<8x8xf32>
    %c0_6 = arith.constant 0 : index
    %c0_7 = arith.constant 0 : index
    %8 = vector.load %arg8[%c0_6, %c0_7] : memref<8x8xf32, #tpu.memory_space<vmem>>, vector<8x8xf32>
    tpu.vector_store %arg8[%c0_6, %c0_7], %7 {strides = array<i32>} : memref<8x8xf32, #tpu.memory_space<vmem>>, vector<8x8xf32>,
    %c0_i32_8 = arith.constant 0 : i32
    %9 = arith.cmpi eq, %arg2, %c0_i32_8 : i32
    %10 = arith.extui %9 : i1 to i32
    %c0_i32_9 = arith.constant 0 : i32
    %11 = arith.cmpi ne, %10, %c0_i32_9 : i32
    scf.if %11 {
      %c0_10 = arith.constant 0 : index
      %c0_11 = arith.constant 0 : index
      %12 = vector.load %arg4[%c0_10, %c0_11] : memref<8x1xf32, #tpu.memory_space<vmem>>, vector<8x1xf32>
      %c0_12 = arith.constant 0 : index
      %c0_13 = arith.constant 0 : index
      %13 = vector.load %arg6[%c0_12, %c0_13] : memref<1x8xf32, #tpu.memory_space<vmem>>, vector<1x8xf32>
      %14 = vector.broadcast %12 : vector<8x1xf32> to vector<8x8xf32>
      %15 = vector.broadcast %13 : vector<1x8xf32> to vector<8x8xf32>
      %16 = arith.mulf %14, %15 : vector<8x8xf32>
      %cst_14 = arith.constant 2.000000e+09 : f32
      %17 = vector.broadcast %cst_14 : f32 to vector<8x8xf32>
      %18 = arith.minimumf %16, %17 : vector<8x8xf32>
      %c0_15 = arith.constant 0 : index
      %c0_16 = arith.constant 0 : index
      %19 = vector.load %arg8[%c0_15, %c0_16] : memref<8x8xf32, #tpu.memory_space<vmem>>, vector<8x8xf32>
      %20 = arith.mulf %19, %18 : vector<8x8xf32>
      %c0_17 = arith.constant 0 : index
      %c0_18 = arith.constant 0 : index
      %21 = vector.load %arg7[%c0_17, %c0_18] : memref<8x8xf32, #tpu.memory_space<vmem>>, vector<8x8xf32>
      tpu.vector_store %arg7[%c0_17, %c0_18], %20 {strides = array<i32>} : memref<8x8xf32, #tpu.memory_space<vmem>>, vector<8x8xf32>,
    } else {
    }
    return
  }
  func.func @transform_0(%arg0: i32, %arg1: i32, %arg2: i32) -> (i32, i32) {
    %c0_i32 = arith.constant 0 : i32
    return %arg0, %arg2 : i32, i32
  }
  func.func @transform_1(%arg0: i32, %arg1: i32, %arg2: i32) -> (i32, i32) {
    %c0_i32 = arith.constant 0 : i32
    %c0_i32_0 = arith.constant 0 : i32
    return %arg0, %c0_i32 : i32, i32
  }
  func.func @transform_2(%arg0: i32, %arg1: i32, %arg2: i32) -> (i32, i32) {
    %c0_i32 = arith.constant 0 : i32
    return %arg1, %arg2 : i32, i32
  }
  func.func @transform_3(%arg0: i32, %arg1: i32, %arg2: i32) -> (i32, i32) {
    %c0_i32 = arith.constant 0 : i32
    %c0_i32_0 = arith.constant 0 : i32
    return %c0_i32, %arg1 : i32, i32
  }
  func.func @transform_4(%arg0: i32, %arg1: i32, %arg2: i32) -> (i32, i32) {
    %c0_i32 = arith.constant 0 : i32
    return %arg0, %arg1 : i32, i32
  }
}

</mosaic_0001>

<llo_original>
// kernel: tpu_custom_call.1
$region0: #{tpu_custom_call.1}
  #allocation0 [shape = 'u32[]', space=smem, size = 0x4, offset = 0x4, fixed_abs, tag = 'smem constant byte address 0x4 - core index']
  #allocation1 [shape = 'u32[144,128]{1,0:T(1,128)}', space=vmem, size = 0x12000, scoped, tag = 'internal scratch']
  #allocation2 [shape = 'f32[8,8]{1,0:T(8,128)}', space=vmem, size = 0x1000, scoped, tag = 'scratch operand']
  %s0 = inlined_call_operand.vmem [shape: f32[8,32], index: 0, kind: input, shape index: {}]
  %s1 = inlined_call_operand.vmem [shape: f32[8,1], index: 1, kind: input, shape index: {}]
  %s2 = inlined_call_operand.vmem [shape: f32[8,32], index: 2, kind: input, shape index: {}]
  %s3 = inlined_call_operand.vmem [shape: f32[1,8], index: 3, kind: input, shape index: {}]
  %s4 = inlined_call_operand.hbm [shape: f32[8,8], index: 4, kind: output, shape index: {}]
  %s5 = sld [smem:[#allocation0]]
  $region34: #{tpu_custom_call.1} parent=0
    _
  %s7 = ssub.s32 1, %s5
  %s8 = scalar_select 0, %s7, %s5
  $region1: #{tpu_custom_call.1} parent=0
    #allocation3 [shape = 'u8[4096]{0}', space=vmem, size = 0x1000, scoped, tag = 'output window, operand 0, single buffered']
    #allocation4 [shape = 's32[1]{0}', space=sflag, size = 0x4, scoped, tag = 'scoped memory for tpu_custom_call.1']
    %9 = vsyncpa [#allocation4], 0
    // Predicated region
    $region2: #{tpu_custom_call.1} parent=1 // pred_check
      _
    $region3: #{tpu_custom_call.1} parent=1 // pred_check_branch
      %11 = sbr.rel (0) target = $region5
    $region4: #{tpu_custom_call.1} parent=1 // pred_region
      _
    $region5: #{tpu_custom_call.1} parent=1 // pred_fallthru
      _
    // Predicated region
    $region6: #{tpu_custom_call.1} parent=1 // pred_check
      _
    $region7: #{tpu_custom_call.1} parent=1 // pred_check_branch
      %13 = sbr.rel (0) target = $region9
    $region8: #{tpu_custom_call.1} parent=1 // pred_region
      _
    $region9: #{tpu_custom_call.1} parent=1 // pred_fallthru
      _
    // Predicated region
    $region10: #{tpu_custom_call.1} parent=1 // pred_check
      _
    $region11: #{tpu_custom_call.1} parent=1 // pred_check_branch
      %15 = sbr.rel (0) target = $region13
    $region12: #{tpu_custom_call.1} parent=1 // pred_region
      _
    $region13: #{tpu_custom_call.1} parent=1 // pred_fallthru
      _
    // Predicated region
    $region14: #{tpu_custom_call.1} parent=1 // pred_check
      _
    $region15: #{tpu_custom_call.1} parent=1 // pred_check_branch
      %17 = sbr.rel (0) target = $region17
    $region16: #{tpu_custom_call.1} parent=1 // pred_region
      _
    $region17: #{tpu_custom_call.1} parent=1 // pred_fallthru
      _
    %p18 = scmp.eq.s32.totalorder 0, 0
    // Predicated region
    $region18: #{tpu_custom_call.1} parent=1 // pred_check
      %p19 = pneg %p18
    $region19: #{tpu_custom_call.1} parent=1 // pred_check_branch
      %21 = sbr.rel (%p19) target = $region21
    $region20: #{tpu_custom_call.1} parent=1 // pred_region
      %vm22 = vcmask 64512
      %23 = vst.msk [vmem:[#allocation2] sm:$0xff] %vm22, 0.0
    $region21: #{tpu_custom_call.1} parent=1 // pred_fallthru
      _
    %v24 = vld [vmem:[#allocation2] sm:$0xff]
    %v25 = vld [vmem:[%s0] sm:$0xff]
    %v26 = vld [vmem:[%s2] sm:$0xff]
    %vm27 = vcmask 261120
    %v29 = vsel %vm27, %v25, 0
    %v32 = vsel %vm27, %v26, 0
    %34 = vmatprep.subr.mxu0 0.0
    %35 = vmatpush1.xpose.msra.mxu0 %v32
    %36 = vmatprep.subr.mxu0 0.0
    %37 = vmatpush1.xpose.msra.mxu0 0.0
    %38 = vmatprep.subr.mxu0 0.0
    %39 = vmatpush1.xpose.msra.mxu0 0.0
    %40 = vmatprep.subr.mxu0 0.0
    %41 = vmatpush1.xpose.msra.mxu0 0.0
    %42 = vmatprep.subr.mxu0 0.0
    %43 = vmatpush1.xpose.msra.mxu0 0.0
    %44 = vmatprep.subr.mxu0 0.0
    %45 = vmatpush1.xpose.msra.mxu0 0.0
    %46 = vmatprep.subr.mxu0 0.0
    %47 = vmatpush1.xpose.msra.mxu0 0.0
    %48 = vmatprep.subr.mxu0 0.0
    %49 = vmatpush1.xpose.msra.mxu0 0.0
    %50 = vmatprep.subr.mxu0 0.0
    %51 = vmatpush1.xpose.msra.mxu0 0.0
    %52 = vmatprep.subr.mxu0 0.0
    %53 = vmatpush1.xpose.msra.mxu0 0.0
    %54 = vmatprep.subr.mxu0 0.0
    %55 = vmatpush1.xpose.msra.mxu0 0.0
    %56 = vmatprep.subr.mxu0 0.0
    %57 = vmatpush1.xpose.msra.mxu0 0.0
    %58 = vmatprep.subr.mxu0 0.0
    %59 = vmatpush1.xpose.msra.mxu0 0.0
    %60 = vmatprep.subr.mxu0 0.0
    %61 = vmatpush1.xpose.msra.mxu0 0.0
    %62 = vmatprep.subr.mxu0 0.0
    %63 = vmatpush1.xpose.msra.mxu0 0.0
    %64 = vmatprep.subr.mxu0 0.0
    %65 = vmatpush1.xpose.msra.mxu0 0.0
    %66 = vmatprep.subr.mxu0 0.0
    %67 = vmatpush1.xpose.msra.mxu0 0.0
    %68 = vmatprep.subr.mxu0 0.0
    %69 = vmatpush1.xpose.msra.mxu0 0.0
    %70 = vmatprep.subr.mxu0 0.0
    %71 = vmatpush1.xpose.msra.mxu0 0.0
    %72 = vmatprep.subr.mxu0 0.0
    %73 = vmatpush1.xpose.msra.mxu0 0.0
    %74 = vmatprep.subr.mxu0 0.0
    %75 = vmatpush1.xpose.msra.mxu0 0.0
    %76 = vmatprep.subr.mxu0 0.0
    %77 = vmatpush1.xpose.msra.mxu0 0.0
    %78 = vmatprep.subr.mxu0 0.0
    %79 = vmatpush1.xpose.msra.mxu0 0.0
    %80 = vmatprep.subr.mxu0 0.0
    %81 = vmatpush1.xpose.msra.mxu0 0.0
    %82 = vmatprep.subr.mxu0 0.0
    %83 = vmatpush1.xpose.msra.mxu0 0.0
    %84 = vmatprep.subr.mxu0 0.0
    %85 = vmatpush1.xpose.msra.mxu0 0.0
    %86 = vmatprep.subr.mxu0 0.0
    %87 = vmatpush1.xpose.msra.mxu0 0.0
    %88 = vmatprep.subr.mxu0 0.0
    %89 = vmatpush1.xpose.msra.mxu0 0.0
    %90 = vmatprep.subr.mxu0 0.0
    %91 = vmatpush1.xpose.msra.mxu0 0.0
    %92 = vmatprep.subr.mxu0 0.0
    %93 = vmatpush1.xpose.msra.mxu0 0.0
    %94 = vmatprep.subr.mxu0 0.0
    %95 = vmatpush1.xpose.msra.mxu0 0.0
    %96 = vmatprep.subr.mxu0 0.0
    %97 = vmatpush1.xpose.msra.mxu0 0.0
    %98 = vmatprep.mubr.f32.mxu0 0.0
    %99 = vmatmul.mubr.f32.gmra.mrb[0].mxu0 %v29
    %v100 = vpop.f32.mrb[0].mxu0
    %v101 = vadd.f32 0.0, %v100
    %v102 = vpop.f32.mrb[0].mxu0
    %103 = vdwg.mxu0
    %v104 = vadd.f32 %v24, %v101
    %vm105 = vcmask 64512
    %106 = vst.msk [vmem:[#allocation2] sm:$0xff] %vm105, %v104
    // Predicated region
    $region22: #{tpu_custom_call.1} parent=1 // pred_check
      %p107 = pneg %p18
    $region23: #{tpu_custom_call.1} parent=1 // pred_check_branch
      %109 = sbr.rel (%p107) target = $region25
    $region24: #{tpu_custom_call.1} parent=1 // pred_region
      %v110 = vld [vmem:[%s1] sm:$0xff]
      %v111 = vld [vmem:[%s3] sm:$0x1]
      %113 = vset.pattern.permute.xlu0 0
      %114 = vperm.xlu0 %113, %v110
      %v115 = vpop.permute.xlu0 %114
      %v118 = vlaneseq
      %v119 = vshrl.u32 %v118, 7
      %v120 = vsub.s32 0, %v119
      %v121 = vrot.slane %v111, %v120
      %v123 = vmul.f32 %v115, %v121
      %v124 = vmin.f32 %v123, 2e+09
      %v125 = vld [vmem:[#allocation2] sm:$0xff]
      %v126 = vmul.f32 %v125, %v124
      %127 = vst.msk [vmem:[#allocation3] sm:$0xff] %vm105, %v126
    $region25: #{tpu_custom_call.1} parent=1 // pred_fallthru
      _
    // Predicated region
    $region26: #{tpu_custom_call.1} parent=1 // pred_check
      _
    $region27: #{tpu_custom_call.1} parent=1 // pred_check_branch
      %129 = sbr.rel (0) target = $region29
    $region28: #{tpu_custom_call.1} parent=1 // pred_region
      %s131 = ssub.s32 128, 128
      %132 = vsyncadd [#allocation4], %s131
      %s134 = sshll.u32 [#allocation3], 4
      %s135 = int_to_ptr.vmem [resolvable:$true] %s134
      %137 = dma.vmem_to_hbm [thread:$0]  %s135, 128, %s4, [#allocation4]
    $region29: #{tpu_custom_call.1} parent=1 // pred_fallthru
      _
    // Predicated region
    $region30: #{tpu_custom_call.1} parent=1 // pred_check
      _
    $region31: #{tpu_custom_call.1} parent=1 // pred_check_branch
      %139 = sbr.rel (0) target = $region33
    $region32: #{tpu_custom_call.1} parent=1 // pred_region
      %140 = dma.done [#allocation4], 128
    $region33: #{tpu_custom_call.1} parent=1 // pred_fallthru
      _
    %141 = vsyncpa [#allocation4], 1

</llo_original>
